<compile_context>
chip_gen: v6e
topology: v6e:2x2x1
jax: 0.10.0
libtpu: 0.0.40
codegen_flags: <defaults>
</compile_context>

<pallas_src>
import functools

import jax
import jax.numpy as jnp
from jax.experimental import pallas as pl
from jax.experimental.pallas import tpu as pltpu


def vgcn_encoder_kernel(x_ref, adj_ref, w1_ref, b1_ref, w2_ref, b2_ref,
                        mu_ref, logstd_ref, *, out_dim):
    """Whole encoder in one invocation; everything resident in VMEM."""
    adj = adj_ref[...]                                      # [N, N] f32, normalized

    # ---- conv1 + ReLU:  h = relu(A_hat @ (x @ W1) + b1) ----
    xw = jnp.dot(x_ref[...].astype(jnp.bfloat16), w1_ref[...],
                 preferred_element_type=jnp.float32)        # [N, C]
    h = jnp.dot(adj, xw, preferred_element_type=jnp.float32) + b1_ref[...]
    h = jnp.maximum(h, 0.0)                                 # [N, C]

    # ---- conv_mu / conv_logstd fused into one wide matmul over [C, 2C] ----
    hw = jnp.dot(h.astype(jnp.bfloat16), w2_ref[...],
                 preferred_element_type=jnp.float32)        # [N, 2C]
    agg = jnp.dot(adj, hw, preferred_element_type=jnp.float32) + b2_ref[...]

    mu_ref[...] = agg[:, :out_dim]
    logstd_ref[...] = agg[:, out_dim:]


def vgcn_encoder(x, adj_norm, params):
    """forward(x, edge_index) -> (mu, logstd); adj_norm precomputed from edges."""
    N, _ = x.shape
    C = params["w1"].shape[1]

    # Fuse the two output heads into a single wide weight / bias.
    w2 = jnp.concatenate([params["w_mu"], params["w_logstd"]], axis=1)   # [C, 2C]
    b2 = jnp.concatenate([params["b_mu"], params["b_logstd"]], axis=1)   # [1, 2C]

    kernel = functools.partial(vgcn_encoder_kernel, out_dim=C)
    vmem = pl.BlockSpec(memory_space=pltpu.MemorySpace.VMEM)

    mu, logstd = pl.pallas_call(
        kernel,
        out_shape=(jax.ShapeDtypeStruct((N, C), jnp.float32),
                   jax.ShapeDtypeStruct((N, C), jnp.float32)),
        in_specs=[vmem, vmem, vmem, vmem, vmem, vmem],
        out_specs=(vmem, vmem),
        compiler_params=pltpu.CompilerParams(
            vmem_limit_bytes=32 * 1024 * 1024),
    )(x, adj_norm,
      params["w1"].astype(jnp.bfloat16), params["b1"],
      w2.astype(jnp.bfloat16), b2)
    return mu, logstd


def build_gcn_adjacency(edge_index, num_nodes):
    """Dense A_hat = D^{-1/2} (A + I) D^{-1/2} from edge_index[2, E]."""
    src, dst = edge_index[0], edge_index[1]
    adj = jnp.zeros((num_nodes, num_nodes), jnp.float32)
    adj = adj.at[dst, src].set(1.0)          # duplicate edges are deduplicated
    adj = jnp.maximum(adj, jnp.eye(num_nodes, dtype=jnp.float32))  # self-loops
    deg = jnp.sum(adj, axis=1)
    d_inv_sqrt = jnp.where(deg > 0, 1.0 / jnp.sqrt(deg), 0.0)
    return adj * d_inv_sqrt[:, None] * d_inv_sqrt[None, :]


def glorot(key, shape):
    fan_in, fan_out = shape[-2], shape[-1]
    lim = (6.0 / (fan_in + fan_out)) ** 0.5
    return jax.random.uniform(key, shape, jnp.float32, -lim, lim)


if __name__ == "__main__":
    # Small, lane-aligned shapes: 16 nodes, input_dim=256, output_dim=128.
    N, F_IN, C = 16, 256, 128
    E = 48

    key = jax.random.PRNGKey(0)
    ks = jax.random.split(key, 6)

    x = jax.random.normal(ks[0], (N, F_IN), jnp.float32)
    src = jax.random.randint(ks[1], (E,), 0, N)
    dst = jax.random.randint(ks[2], (E,), 0, N)
    edge_index = jnp.stack([src, dst])              # [2, E]
    adj_norm = build_gcn_adjacency(edge_index, N)   # [N, N]

    params = {
        "w1": glorot(ks[3], (F_IN, C)),
        "b1": jnp.zeros((1, C), jnp.float32),
        "w_mu": glorot(ks[4], (C, C)),
        "b_mu": jnp.zeros((1, C), jnp.float32),
        "w_logstd": glorot(ks[5], (C, C)),
        "b_logstd": jnp.zeros((1, C), jnp.float32),
    }

    mu, logstd = jax.jit(vgcn_encoder)(x, adj_norm, params)
    jax.block_until_ready((mu, logstd))
    assert mu.shape == (N, C) and logstd.shape == (N, C)
    assert mu.dtype == jnp.float32 and logstd.dtype == jnp.float32
    print("KERNEL_OK")
</pallas_src>

<mosaic_0001>
module attributes {stable_mosaic.version = 11 : i64} {
  func.func @vgcn_encoder_kernel(%arg0: memref<16x256xf32, #tpu.memory_space<vmem>>, %arg1: memref<16x16xf32, #tpu.memory_space<vmem>>, %arg2: memref<256x128xbf16, #tpu.memory_space<vmem>>, %arg3: memref<1x128xf32, #tpu.memory_space<vmem>>, %arg4: memref<128x256xbf16, #tpu.memory_space<vmem>>, %arg5: memref<1x256xf32, #tpu.memory_space<vmem>>, %arg6: memref<16x128xf32, #tpu.memory_space<vmem>>, %arg7: memref<16x128xf32, #tpu.memory_space<vmem>>) attributes {dimension_semantics = [], scalar_prefetch = 0 : i64, scratch_operands = 0 : i64, tpu.core_type = #tpu.core_type<tc>} {
    %c0 = arith.constant 0 : index
    %c0_0 = arith.constant 0 : index
    %0 = vector.load %arg1[%c0, %c0_0] : memref<16x16xf32, #tpu.memory_space<vmem>>, vector<16x16xf32>
    %c0_1 = arith.constant 0 : index
    %c0_2 = arith.constant 0 : index
    %1 = vector.load %arg0[%c0_1, %c0_2] : memref<16x256xf32, #tpu.memory_space<vmem>>, vector<16x256xf32>
    %2 = arith.truncf %1 : vector<16x256xf32> to vector<16x256xbf16>
    %c0_3 = arith.constant 0 : index
    %c0_4 = arith.constant 0 : index
    %3 = vector.load %arg2[%c0_3, %c0_4] : memref<256x128xbf16, #tpu.memory_space<vmem>>, vector<256x128xbf16>
    %cst = arith.constant dense<0.000000e+00> : vector<16x128xf32>
    %4 = tpu.matmul %2, %3, %cst {dimension_numbers = #tpu.dot_dimension_numbers<[1], [0], [0], [1], [0, 0, 1, 1], [], []>} : vector<16x256xbf16>, vector<256x128xbf16>, vector<16x128xf32> -> vector<16x128xf32>
    %cst_5 = arith.constant dense<0.000000e+00> : vector<16x128xf32>
    %5 = tpu.matmul %0, %4, %cst_5 {dimension_numbers = #tpu.dot_dimension_numbers<[1], [0], [0], [1], [0, 0, 1, 1], [], []>} : vector<16x16xf32>, vector<16x128xf32>, vector<16x128xf32> -> vector<16x128xf32>
    %c0_6 = arith.constant 0 : index
    %c0_7 = arith.constant 0 : index
    %6 = vector.load %arg3[%c0_6, %c0_7] : memref<1x128xf32, #tpu.memory_space<vmem>>, vector<1x128xf32>
    %7 = vector.broadcast %6 : vector<1x128xf32> to vector<16x128xf32>
    %8 = arith.addf %5, %7 : vector<16x128xf32>
    %cst_8 = arith.constant 0.000000e+00 : f32
    %9 = vector.broadcast %cst_8 : f32 to vector<16x128xf32>
    %10 = arith.maximumf %8, %9 : vector<16x128xf32>
    %11 = arith.truncf %10 : vector<16x128xf32> to vector<16x128xbf16>
    %c0_9 = arith.constant 0 : index
    %c0_10 = arith.constant 0 : index
    %12 = vector.load %arg4[%c0_9, %c0_10] : memref<128x256xbf16, #tpu.memory_space<vmem>>, vector<128x256xbf16>
    %cst_11 = arith.constant dense<0.000000e+00> : vector<16x256xf32>
    %13 = tpu.matmul %11, %12, %cst_11 {dimension_numbers = #tpu.dot_dimension_numbers<[1], [0], [0], [1], [0, 0, 1, 1], [], []>} : vector<16x128xbf16>, vector<128x256xbf16>, vector<16x256xf32> -> vector<16x256xf32>
    %cst_12 = arith.constant dense<0.000000e+00> : vector<16x256xf32>
    %14 = tpu.matmul %0, %13, %cst_12 {dimension_numbers = #tpu.dot_dimension_numbers<[1], [0], [0], [1], [0, 0, 1, 1], [], []>} : vector<16x16xf32>, vector<16x256xf32>, vector<16x256xf32> -> vector<16x256xf32>
    %c0_13 = arith.constant 0 : index
    %c0_14 = arith.constant 0 : index
    %15 = vector.load %arg5[%c0_13, %c0_14] : memref<1x256xf32, #tpu.memory_space<vmem>>, vector<1x256xf32>
    %16 = vector.broadcast %15 : vector<1x256xf32> to vector<16x256xf32>
    %17 = arith.addf %14, %16 : vector<16x256xf32>
    %18 = vector.extract_strided_slice %17 {offsets = [0, 0], sizes = [16, 128], strides = [1, 1]} : vector<16x256xf32> to vector<16x128xf32>
    %c0_15 = arith.constant 0 : index
    %c0_16 = arith.constant 0 : index
    %19 = vector.load %arg6[%c0_15, %c0_16] : memref<16x128xf32, #tpu.memory_space<vmem>>, vector<16x128xf32>
    tpu.vector_store %arg6[%c0_15, %c0_16], %18 {strides = array<i32>} : memref<16x128xf32, #tpu.memory_space<vmem>>, vector<16x128xf32>,
    %20 = vector.extract_strided_slice %17 {offsets = [0, 128], sizes = [16, 128], strides = [1, 1]} : vector<16x256xf32> to vector<16x128xf32>
    %c0_17 = arith.constant 0 : index
    %c0_18 = arith.constant 0 : index
    %21 = vector.load %arg7[%c0_17, %c0_18] : memref<16x128xf32, #tpu.memory_space<vmem>>, vector<16x128xf32>
    tpu.vector_store %arg7[%c0_17, %c0_18], %20 {strides = array<i32>} : memref<16x128xf32, #tpu.memory_space<vmem>>, vector<16x128xf32>,
    return
  }
}

</mosaic_0001>

<llo_original>
// kernel: vgcn_encoder.1
$region0: #{vgcn_encoder.1}
  #allocation0 [shape = 'u32[]', space=smem, size = 0x4, offset = 0x4, fixed_abs, tag = 'smem constant byte address 0x4 - core index']
  #allocation1 [shape = 'u32[144,128]{1,0:T(1,128)}', space=vmem, size = 0x12000, scoped, tag = 'internal scratch']
  %s0 = inlined_call_operand.vmem [shape: f32[16,256], index: 0, kind: input, shape index: {}]
  %s1 = inlined_call_operand.vmem [shape: f32[16,16], index: 1, kind: input, shape index: {}]
  %s2 = inlined_call_operand.vmem [shape: bf16[256,128], index: 2, kind: input, shape index: {}]
  %s3 = inlined_call_operand.vmem [shape: f32[1,128], index: 3, kind: input, shape index: {}]
  %s4 = inlined_call_operand.vmem [shape: bf16[128,256], index: 4, kind: input, shape index: {}]
  %s5 = inlined_call_operand.vmem [shape: f32[1,256], index: 5, kind: input, shape index: {}]
  %s6 = inlined_call_operand.hbm [shape: f32[16,128], index: 6, kind: output, shape index: {0}]
  %s7 = inlined_call_operand.hbm [shape: f32[16,128], index: 7, kind: output, shape index: {1}]
  %8 = xla_tuple %s6, %s7
  %s9 = sld [smem:[#allocation0]]
  $region42: #{vgcn_encoder.1} parent=0
    _
  %s11 = ssub.s32 1, %s9
  %s12 = scalar_select 0, %s11, %s9
  $region1: #{vgcn_encoder.1} parent=0
    #allocation2 [shape = 'u8[8192]{0}', space=vmem, size = 0x2000, scoped, tag = 'output window, operand 0, single buffered']
    #allocation3 [shape = 's32[1]{0}', space=sflag, size = 0x4, scoped, tag = 'scoped memory for vgcn_encoder.1']
    #allocation4 [shape = 'u8[8192]{0}', space=vmem, size = 0x2000, scoped, tag = 'output window, operand 1, single buffered']
    #allocation5 [shape = 's32[1]{0}', space=sflag, size = 0x4, scoped, tag = 'scoped memory for vgcn_encoder.1']
    %13 = vsyncpa [#allocation3], 0
    %14 = vsyncpa [#allocation5], 0
    // Predicated region
    $region2: #{vgcn_encoder.1} parent=1 // pred_check
      _
    $region3: #{vgcn_encoder.1} parent=1 // pred_check_branch
      %16 = sbr.rel (0) target = $region5
    $region4: #{vgcn_encoder.1} parent=1 // pred_region
      _
    $region5: #{vgcn_encoder.1} parent=1 // pred_fallthru
      _
    // Predicated region
    $region6: #{vgcn_encoder.1} parent=1 // pred_check
      _
    $region7: #{vgcn_encoder.1} parent=1 // pred_check_branch
      %18 = sbr.rel (0) target = $region9
    $region8: #{vgcn_encoder.1} parent=1 // pred_region
      _
    $region9: #{vgcn_encoder.1} parent=1 // pred_fallthru
      _
    // Predicated region
    $region10: #{vgcn_encoder.1} parent=1 // pred_check
      _
    $region11: #{vgcn_encoder.1} parent=1 // pred_check_branch
      %20 = sbr.rel (0) target = $region13
    $region12: #{vgcn_encoder.1} parent=1 // pred_region
      _
    $region13: #{vgcn_encoder.1} parent=1 // pred_fallthru
      _
    // Predicated region
    $region14: #{vgcn_encoder.1} parent=1 // pred_check
      _
    $region15: #{vgcn_encoder.1} parent=1 // pred_check_branch
      %22 = sbr.rel (0) target = $region17
    $region16: #{vgcn_encoder.1} parent=1 // pred_region
      _
    $region17: #{vgcn_encoder.1} parent=1 // pred_fallthru
      _
    // Predicated region
    $region18: #{vgcn_encoder.1} parent=1 // pred_check
      _
    $region19: #{vgcn_encoder.1} parent=1 // pred_check_branch
      %24 = sbr.rel (0) target = $region21
    $region20: #{vgcn_encoder.1} parent=1 // pred_region
      _
    $region21: #{vgcn_encoder.1} parent=1 // pred_fallthru
      _
    // Predicated region
    $region22: #{vgcn_encoder.1} parent=1 // pred_check
      _
    $region23: #{vgcn_encoder.1} parent=1 // pred_check_branch
      %26 = sbr.rel (0) target = $region25
    $region24: #{vgcn_encoder.1} parent=1 // pred_region
      _
    $region25: #{vgcn_encoder.1} parent=1 // pred_fallthru
      _
    %v28 = vld [vmem:[%s1] sm:$0xff]
    %v29 = vld [vmem:[%s1 + $0x8] sm:$0xff]
    %v30 = vld [vmem:[%s0] sm:$0xff]
    %v31 = vld [vmem:[%s0 + $0x8] sm:$0xff]
    %v32 = vld [vmem:[%s0 + $0x10] sm:$0xff]
    %v33 = vld [vmem:[%s0 + $0x18] sm:$0xff]
    %v34 = vpack.c.bf16 %v32, %v30
    %v35 = vpack.c.bf16 %v33, %v31
    %v36 = vld [vmem:[%s2] sm:$0xf]
    %v37 = vld [vmem:[%s2 + $0x4] sm:$0xf]
    %v38 = vld [vmem:[%s2 + $0x8] sm:$0xf]
    %v39 = vld [vmem:[%s2 + $0xc] sm:$0xf]
    %v40 = vld [vmem:[%s2 + $0x10] sm:$0xf]
    %v41 = vld [vmem:[%s2 + $0x14] sm:$0xf]
    %v42 = vld [vmem:[%s2 + $0x18] sm:$0xf]
    %v43 = vld [vmem:[%s2 + $0x1c] sm:$0xf]
    %v44 = vld [vmem:[%s2 + $0x20] sm:$0xf]
    %v45 = vld [vmem:[%s2 + $0x24] sm:$0xf]
    %v46 = vld [vmem:[%s2 + $0x28] sm:$0xf]
    %v47 = vld [vmem:[%s2 + $0x2c] sm:$0xf]
    %v48 = vld [vmem:[%s2 + $0x30] sm:$0xf]
    %v49 = vld [vmem:[%s2 + $0x34] sm:$0xf]
    %v50 = vld [vmem:[%s2 + $0x38] sm:$0xf]
    %v51 = vld [vmem:[%s2 + $0x3c] sm:$0xf]
    %v52 = vld [vmem:[%s2 + $0x40] sm:$0xf]
    %v53 = vld [vmem:[%s2 + $0x44] sm:$0xf]
    %v54 = vld [vmem:[%s2 + $0x48] sm:$0xf]
    %v55 = vld [vmem:[%s2 + $0x4c] sm:$0xf]
    %v56 = vld [vmem:[%s2 + $0x50] sm:$0xf]
    %v57 = vld [vmem:[%s2 + $0x54] sm:$0xf]
    %v58 = vld [vmem:[%s2 + $0x58] sm:$0xf]
    %v59 = vld [vmem:[%s2 + $0x5c] sm:$0xf]
    %v60 = vld [vmem:[%s2 + $0x60] sm:$0xf]
    %v61 = vld [vmem:[%s2 + $0x64] sm:$0xf]
    %v62 = vld [vmem:[%s2 + $0x68] sm:$0xf]
    %v63 = vld [vmem:[%s2 + $0x6c] sm:$0xf]
    %v64 = vld [vmem:[%s2 + $0x70] sm:$0xf]
    %v65 = vld [vmem:[%s2 + $0x74] sm:$0xf]
    %v66 = vld [vmem:[%s2 + $0x78] sm:$0xf]
    %v67 = vld [vmem:[%s2 + $0x7c] sm:$0xf]
    %v100 = vunpack.c.l.b16 %v36
    %v101 = vunpack.c.l.b16 %v37
    %v102 = vunpack.c.l.b16 %v38
    %v103 = vunpack.c.l.b16 %v39
    %v104 = vunpack.c.l.b16 %v40
    %v105 = vunpack.c.l.b16 %v41
    %v106 = vunpack.c.l.b16 %v42
    %v107 = vunpack.c.l.b16 %v43
    %v108 = vunpack.c.l.b16 %v44
    %v109 = vunpack.c.l.b16 %v45
    %v110 = vunpack.c.l.b16 %v46
    %v111 = vunpack.c.l.b16 %v47
    %v112 = vunpack.c.l.b16 %v48
    %v113 = vunpack.c.l.b16 %v49
    %v114 = vunpack.c.l.b16 %v50
    %v115 = vunpack.c.l.b16 %v51
    %v116 = vunpack.c.l.b16 %v52
    %v117 = vunpack.c.l.b16 %v53
    %v118 = vunpack.c.l.b16 %v54
    %v119 = vunpack.c.l.b16 %v55
    %v120 = vunpack.c.l.b16 %v56
    %v121 = vunpack.c.l.b16 %v57
    %v122 = vunpack.c.l.b16 %v58
    %v123 = vunpack.c.l.b16 %v59
    %v124 = vunpack.c.l.b16 %v60
    %v125 = vunpack.c.l.b16 %v61
    %v126 = vunpack.c.l.b16 %v62
    %v127 = vunpack.c.l.b16 %v63
    %v128 = vunpack.c.l.b16 %v64
    %v129 = vunpack.c.l.b16 %v65
    %v130 = vunpack.c.l.b16 %v66
    %v131 = vunpack.c.l.b16 %v67
    %v132 = vpack.c.b16 %v101, %v100
    %v133 = vpack.c.b16 %v103, %v102
    %v134 = vpack.c.b16 %v105, %v104
    %v135 = vpack.c.b16 %v107, %v106
    %v136 = vpack.c.b16 %v109, %v108
    %v137 = vpack.c.b16 %v111, %v110
    %v138 = vpack.c.b16 %v113, %v112
    %v139 = vpack.c.b16 %v115, %v114
    %v140 = vpack.c.b16 %v117, %v116
    %v141 = vpack.c.b16 %v119, %v118
    %v142 = vpack.c.b16 %v121, %v120
    %v143 = vpack.c.b16 %v123, %v122
    %v144 = vpack.c.b16 %v125, %v124
    %v145 = vpack.c.b16 %v127, %v126
    %v146 = vpack.c.b16 %v129, %v128
    %v147 = vpack.c.b16 %v131, %v130
    %164 = vmatprep.subr.bf16.mxu0 0
    %165 = vmatpush1.bf16.msra.mxu0 %v139
    %166 = vmatprep.subr.bf16.mxu0 0
    %167 = vmatpush1.bf16.msra.mxu0 %v138
    %168 = vmatprep.subr.bf16.mxu0 0
    %169 = vmatpush1.bf16.msra.mxu0 %v137
    %170 = vmatprep.subr.bf16.mxu0 0
    %171 = vmatpush1.bf16.msra.mxu0 %v136
    %172 = vmatprep.subr.bf16.mxu0 0
    %173 = vmatpush1.bf16.msra.mxu0 %v135
    %174 = vmatprep.subr.bf16.mxu0 0
    %175 = vmatpush1.bf16.msra.mxu0 %v134
    %176 = vmatprep.subr.bf16.mxu0 0
    %177 = vmatpush1.bf16.msra.mxu0 %v133
    %178 = vmatprep.subr.bf16.mxu0 0
    %179 = vmatpush1.bf16.msra.mxu0 %v132
    %180 = vmatprep.subr.bf16.mxu0 0
    %181 = vmatpush2.bf16.msra.mxu0 %v147
    %182 = vmatprep.subr.bf16.mxu0 0
    %183 = vmatpush2.bf16.msra.mxu0 %v146
    %184 = vmatprep.subr.bf16.mxu0 0
    %185 = vmatpush2.bf16.msra.mxu0 %v145
    %186 = vmatprep.subr.bf16.mxu0 0
    %187 = vmatpush2.bf16.msra.mxu0 %v144
    %188 = vmatprep.subr.bf16.mxu0 0
    %189 = vmatpush2.bf16.msra.mxu0 %v143
    %190 = vmatprep.subr.bf16.mxu0 0
    %191 = vmatpush2.bf16.msra.mxu0 %v142
    %192 = vmatprep.subr.bf16.mxu0 0
    %193 = vmatpush2.bf16.msra.mxu0 %v141
    %194 = vmatprep.subr.bf16.mxu0 0
    %195 = vmatpush2.bf16.msra.mxu0 %v140
    %196 = vmatprep.mubr.bf16.mxu0 %v35
    %197 = vmatmul.mubr.bf16.gmra.mxu0 %v34
    %v198 = vpop.f32.mrf.mxu0
    %v199 = vadd.f32 0.0, %v198
    %v200 = vpop.f32.mrf.mxu0
    %v201 = vpop.f32.mrf.mxu0
    %v202 = vadd.f32 0.0, %v201
    %v203 = vpop.f32.mrf.mxu0
    %204 = vdwg.mxu0
    %v205 = vld [vmem:[%s3] sm:$0x1]
    %v207 = vlaneseq
    %v208 = vshrl.u32 %v207, 7
    %v209 = vsub.s32 0, %v208
    %v210 = vrot.slane %v205, %v209
    %vm212 = vcmask 130048
    %v214 = vsel %vm212, %v28, 0
    %v217 = vsel %vm212, %v29, 0
    %219 = vmatprep.subr.mxu0 0.0
    %220 = vmatpush1.msra.mxu0 0.0
    %221 = vmatprep.subr.mxu0 0.0
    %222 = vmatpush1.msra.mxu0 0.0
    %223 = vmatprep.subr.mxu0 0.0
    %224 = vmatpush1.msra.mxu0 0.0
    %225 = vmatprep.subr.mxu0 0.0
    %226 = vmatpush1.msra.mxu0 0.0
    %227 = vmatprep.subr.mxu0 0.0
    %228 = vmatpush1.msra.mxu0 0.0
    %229 = vmatprep.subr.mxu0 0.0
    %230 = vmatpush1.msra.mxu0 0.0
    %231 = vmatprep.subr.mxu0 0.0
    %232 = vmatpush1.msra.mxu0 0.0
    %233 = vmatprep.subr.mxu0 0.0
    %234 = vmatpush1.msra.mxu0 0.0
    %235 = vmatprep.subr.mxu0 0.0
    %236 = vmatpush1.msra.mxu0 0.0
    %237 = vmatprep.subr.mxu0 0.0
    %238 = vmatpush1.msra.mxu0 0.0
    %239 = vmatprep.subr.mxu0 0.0
    %240 = vmatpush1.msra.mxu0 0.0
    %241 = vmatprep.subr.mxu0 0.0
    %242 = vmatpush1.msra.mxu0 0.0
    %243 = vmatprep.subr.mxu0 0.0
    %244 = vmatpush1.msra.mxu0 0.0
    %245 = vmatprep.subr.mxu0 0.0
    %246 = vmatpush1.msra.mxu0 0.0
    %247 = vmatprep.subr.mxu0 0.0
    %248 = vmatpush1.msra.mxu0 %v202
    %249 = vmatprep.subr.mxu0 0.0
    %250 = vmatpush1.msra.mxu0 %v199
    %251 = vmatprep.subr.mxu0 0.0
    %252 = vmatpush2.msra.mxu0 0.0
    %253 = vmatprep.subr.mxu0 0.0
    %254 = vmatpush2.msra.mxu0 0.0
    %255 = vmatprep.subr.mxu0 0.0
    %256 = vmatpush2.msra.mxu0 0.0
    %257 = vmatprep.subr.mxu0 0.0
    %258 = vmatpush2.msra.mxu0 0.0
    %259 = vmatprep.subr.mxu0 0.0
    %260 = vmatpush2.msra.mxu0 0.0
    %261 = vmatprep.subr.mxu0 0.0
    %262 = vmatpush2.msra.mxu0 0.0
    %263 = vmatprep.subr.mxu0 0.0
    %264 = vmatpush2.msra.mxu0 0.0
    %265 = vmatprep.subr.mxu0 0.0
    %266 = vmatpush2.msra.mxu0 0.0
    %267 = vmatprep.subr.mxu0 0.0
    %268 = vmatpush2.msra.mxu0 0.0
    %269 = vmatprep.subr.mxu0 0.0
    %270 = vmatpush2.msra.mxu0 0.0
    %271 = vmatprep.subr.mxu0 0.0
    %272 = vmatpush2.msra.mxu0 0.0
    %273 = vmatprep.subr.mxu0 0.0
    %274 = vmatpush2.msra.mxu0 0.0
    %275 = vmatprep.subr.mxu0 0.0
    %276 = vmatpush2.msra.mxu0 0.0
    %277 = vmatprep.subr.mxu0 0.0
    %278 = vmatpush2.msra.mxu0 0.0
    %279 = vmatprep.subr.mxu0 0.0
    %280 = vmatpush2.msra.mxu0 0.0
    %281 = vmatprep.subr.mxu0 0.0
    %282 = vmatpush2.msra.mxu0 0.0
    %283 = vmatprep.mubr.f32.mxu0 0.0
    %284 = vmatmul.mubr.f32.gmra.mxu0 %v214
    %v285 = vpop.f32.mrf.mxu0
    %v286 = vadd.f32 %v210, %v285
    %v287 = vpop.f32.mrf.mxu0
    %288 = vmatprep.mubr.f32.mxu0 0.0
    %289 = vmatmul.mubr.f32.gmra.mxu0 %v217
    %v290 = vpop.f32.mrf.mxu0
    %v291 = vadd.f32 %v210, %v290
    %v292 = vpop.f32.mrf.mxu0
    %293 = vdwg.mxu0
    %v294 = vmax.f32 %v286, 0.0
    %v295 = vmax.f32 %v291, 0.0
    %v296 = vpack.c.bf16 %v295, %v294
    %v297 = vld [vmem:[%s4] sm:$0xff]
    %v298 = vld [vmem:[%s4 + $0x8] sm:$0xff]
    %v299 = vld [vmem:[%s4 + $0x10] sm:$0xff]
    %v300 = vld [vmem:[%s4 + $0x18] sm:$0xff]
    %v301 = vld [vmem:[%s4 + $0x20] sm:$0xff]
    %v302 = vld [vmem:[%s4 + $0x28] sm:$0xff]
    %v303 = vld [vmem:[%s4 + $0x30] sm:$0xff]
    %v304 = vld [vmem:[%s4 + $0x38] sm:$0xff]
    %v305 = vld [vmem:[%s4 + $0x40] sm:$0xff]
    %v306 = vld [vmem:[%s4 + $0x48] sm:$0xff]
    %v307 = vld [vmem:[%s4 + $0x50] sm:$0xff]
    %v308 = vld [vmem:[%s4 + $0x58] sm:$0xff]
    %v309 = vld [vmem:[%s4 + $0x60] sm:$0xff]
    %v310 = vld [vmem:[%s4 + $0x68] sm:$0xff]
    %v311 = vld [vmem:[%s4 + $0x70] sm:$0xff]
    %v312 = vld [vmem:[%s4 + $0x78] sm:$0xff]
    %v329 = vunpack.c.l.b16 %v297
    %v330 = vunpack.c.h.b16 %v297
    %v331 = vunpack.c.l.b16 %v298
    %v332 = vunpack.c.h.b16 %v298
    %v333 = vunpack.c.l.b16 %v299
    %v334 = vunpack.c.h.b16 %v299
    %v335 = vunpack.c.l.b16 %v300
    %v336 = vunpack.c.h.b16 %v300
    %v337 = vunpack.c.l.b16 %v301
    %v338 = vunpack.c.h.b16 %v301
    %v339 = vunpack.c.l.b16 %v302
    %v340 = vunpack.c.h.b16 %v302
    %v341 = vunpack.c.l.b16 %v303
    %v342 = vunpack.c.h.b16 %v303
    %v343 = vunpack.c.l.b16 %v304
    %v344 = vunpack.c.h.b16 %v304
    %v345 = vunpack.c.l.b16 %v305
    %v346 = vunpack.c.h.b16 %v305
    %v347 = vunpack.c.l.b16 %v306
    %v348 = vunpack.c.h.b16 %v306
    %v349 = vunpack.c.l.b16 %v307
    %v350 = vunpack.c.h.b16 %v307
    %v351 = vunpack.c.l.b16 %v308
    %v352 = vunpack.c.h.b16 %v308
    %v353 = vunpack.c.l.b16 %v309
    %v354 = vunpack.c.h.b16 %v309
    %v355 = vunpack.c.l.b16 %v310
    %v356 = vunpack.c.h.b16 %v310
    %v357 = vunpack.c.l.b16 %v311
    %v358 = vunpack.c.h.b16 %v311
    %v359 = vunpack.c.l.b16 %v312
    %v360 = vunpack.c.h.b16 %v312
    %v361 = vpack.c.b16 %v331, %v329
    %v362 = vpack.c.b16 %v332, %v330
    %v363 = vpack.c.b16 %v335, %v333
    %v364 = vpack.c.b16 %v336, %v334
    %v365 = vpack.c.b16 %v339, %v337
    %v366 = vpack.c.b16 %v340, %v338
    %v367 = vpack.c.b16 %v343, %v341
    %v368 = vpack.c.b16 %v344, %v342
    %v369 = vpack.c.b16 %v347, %v345
    %v370 = vpack.c.b16 %v348, %v346
    %v371 = vpack.c.b16 %v351, %v349
    %v372 = vpack.c.b16 %v352, %v350
    %v373 = vpack.c.b16 %v355, %v353
    %v374 = vpack.c.b16 %v356, %v354
    %v375 = vpack.c.b16 %v359, %v357
    %v376 = vpack.c.b16 %v360, %v358
    %393 = vmatprep.subr.bf16.mxu0 %v376
    %394 = vmatpush1.bf16.msra.mxu0 %v375
    %395 = vmatprep.subr.bf16.mxu0 %v374
    %396 = vmatpush1.bf16.msra.mxu0 %v373
    %397 = vmatprep.subr.bf16.mxu0 %v372
    %398 = vmatpush1.bf16.msra.mxu0 %v371
    %399 = vmatprep.subr.bf16.mxu0 %v370
    %400 = vmatpush1.bf16.msra.mxu0 %v369
    %401 = vmatprep.subr.bf16.mxu0 %v368
    %402 = vmatpush1.bf16.msra.mxu0 %v367
    %403 = vmatprep.subr.bf16.mxu0 %v366
    %404 = vmatpush1.bf16.msra.mxu0 %v365
    %405 = vmatprep.subr.bf16.mxu0 %v364
    %406 = vmatpush1.bf16.msra.mxu0 %v363
    %407 = vmatprep.subr.bf16.mxu0 %v362
    %408 = vmatpush1.bf16.msra.mxu0 %v361
    %409 = vmatprep.subr.bf16.mxu0 0
    %410 = vmatpush2.bf16.msra.mxu0 0
    %411 = vmatprep.subr.bf16.mxu0 0
    %412 = vmatpush2.bf16.msra.mxu0 0
    %413 = vmatprep.subr.bf16.mxu0 0
    %414 = vmatpush2.bf16.msra.mxu0 0
    %415 = vmatprep.subr.bf16.mxu0 0
    %416 = vmatpush2.bf16.msra.mxu0 0
    %417 = vmatprep.subr.bf16.mxu0 0
    %418 = vmatpush2.bf16.msra.mxu0 0
    %419 = vmatprep.subr.bf16.mxu0 0
    %420 = vmatpush2.bf16.msra.mxu0 0
    %421 = vmatprep.subr.bf16.mxu0 0
    %422 = vmatpush2.bf16.msra.mxu0 0
    %423 = vmatprep.subr.bf16.mxu0 0
    %424 = vmatpush2.bf16.msra.mxu0 0
    %425 = vmatprep.mubr.bf16.mxu0 0
    %426 = vmatmul.mubr.bf16.gmra.mxu0 %v296
    %v427 = vpop.f32.mrf.mxu0
    %v428 = vadd.f32 0.0, %v427
    %v429 = vpop.f32.mrf.mxu0
    %v430 = vadd.f32 0.0, %v429
    %v431 = vpop.f32.mrf.mxu0
    %v432 = vadd.f32 0.0, %v431
    %v433 = vpop.f32.mrf.mxu0
    %v434 = vadd.f32 0.0, %v433
    %435 = vdwg.mxu0
    %v436 = vld [vmem:[%s5] sm:$0x3]
    %v438 = vlaneseq
    %v439 = vshrl.u32 %v438, 7
    %v440 = vsub.s32 0, %v439
    %v441 = vrot.slane %v436, %v440
    %v442 = vlaneseq
    %v443 = vshrl.u32 %v442, 7
    %v444 = vsub.s32 1, %v443
    %v445 = vrot.slane %v436, %v444
    %448 = vmatprep.subr.mxu0 0.0
    %449 = vmatpush1.msra.mxu0 0.0
    %450 = vmatprep.subr.mxu0 0.0
    %451 = vmatpush1.msra.mxu0 0.0
    %452 = vmatprep.subr.mxu0 0.0
    %453 = vmatpush1.msra.mxu0 0.0
    %454 = vmatprep.subr.mxu0 0.0
    %455 = vmatpush1.msra.mxu0 0.0
    %456 = vmatprep.subr.mxu0 0.0
    %457 = vmatpush1.msra.mxu0 0.0
    %458 = vmatprep.subr.mxu0 0.0
    %459 = vmatpush1.msra.mxu0 0.0
    %460 = vmatprep.subr.mxu0 0.0
    %461 = vmatpush1.msra.mxu0 0.0
    %462 = vmatprep.subr.mxu0 0.0
    %463 = vmatpush1.msra.mxu0 0.0
    %464 = vmatprep.subr.mxu0 0.0
    %465 = vmatpush1.msra.mxu0 0.0
    %466 = vmatprep.subr.mxu0 0.0
    %467 = vmatpush1.msra.mxu0 0.0
    %468 = vmatprep.subr.mxu0 0.0
    %469 = vmatpush1.msra.mxu0 0.0
    %470 = vmatprep.subr.mxu0 0.0
    %471 = vmatpush1.msra.mxu0 0.0
    %472 = vmatprep.subr.mxu0 0.0
    %473 = vmatpush1.msra.mxu0 0.0
    %474 = vmatprep.subr.mxu0 0.0
    %475 = vmatpush1.msra.mxu0 0.0
    %476 = vmatprep.subr.mxu0 %v434
    %477 = vmatpush1.msra.mxu0 %v432
    %478 = vmatprep.subr.mxu0 %v430
    %479 = vmatpush1.msra.mxu0 %v428
    %480 = vmatprep.subr.mxu0 0.0
    %481 = vmatpush2.msra.mxu0 0.0
    %482 = vmatprep.subr.mxu0 0.0
    %483 = vmatpush2.msra.mxu0 0.0
    %484 = vmatprep.subr.mxu0 0.0
    %485 = vmatpush2.msra.mxu0 0.0
    %486 = vmatprep.subr.mxu0 0.0
    %487 = vmatpush2.msra.mxu0 0.0
    %488 = vmatprep.subr.mxu0 0.0
    %489 = vmatpush2.msra.mxu0 0.0
    %490 = vmatprep.subr.mxu0 0.0
    %491 = vmatpush2.msra.mxu0 0.0
    %492 = vmatprep.subr.mxu0 0.0
    %493 = vmatpush2.msra.mxu0 0.0
    %494 = vmatprep.subr.mxu0 0.0
    %495 = vmatpush2.msra.mxu0 0.0
    %496 = vmatprep.subr.mxu0 0.0
    %497 = vmatpush2.msra.mxu0 0.0
    %498 = vmatprep.subr.mxu0 0.0
    %499 = vmatpush2.msra.mxu0 0.0
    %500 = vmatprep.subr.mxu0 0.0
    %501 = vmatpush2.msra.mxu0 0.0
    %502 = vmatprep.subr.mxu0 0.0
    %503 = vmatpush2.msra.mxu0 0.0
    %504 = vmatprep.subr.mxu0 0.0
    %505 = vmatpush2.msra.mxu0 0.0
    %506 = vmatprep.subr.mxu0 0.0
    %507 = vmatpush2.msra.mxu0 0.0
    %508 = vmatprep.subr.mxu0 0.0
    %509 = vmatpush2.msra.mxu0 0.0
    %510 = vmatprep.subr.mxu0 0.0
    %511 = vmatpush2.msra.mxu0 0.0
    %512 = vmatprep.mubr.f32.mxu0 0.0
    %513 = vmatmul.mubr.f32.gmra.mxu0 %v214
    %v514 = vpop.f32.mrf.mxu0
    %v515 = vadd.f32 %v441, %v514
    %v516 = vpop.f32.mrf.mxu0
    %v517 = vadd.f32 %v445, %v516
    %518 = vmatprep.mubr.f32.mxu0 0.0
    %519 = vmatmul.mubr.f32.gmra.mxu0 %v217
    %v520 = vpop.f32.mrf.mxu0
    %v521 = vadd.f32 %v441, %v520
    %v522 = vpop.f32.mrf.mxu0
    %v523 = vadd.f32 %v445, %v522
    %524 = vdwg.mxu0
    %525 = vst [vmem:[#allocation2] sm:$0xff] %v515
    %526 = vst [vmem:[#allocation2 + $0x8] sm:$0xff] %v521
    %527 = vst [vmem:[#allocation4] sm:$0xff] %v517
    %528 = vst [vmem:[#allocation4 + $0x8] sm:$0xff] %v523
    // Predicated region
    $region26: #{vgcn_encoder.1} parent=1 // pred_check
      _
    $region27: #{vgcn_encoder.1} parent=1 // pred_check_branch
      %530 = sbr.rel (0) target = $region29
    $region28: #{vgcn_encoder.1} parent=1 // pred_region
      %s532 = ssub.s32 256, 256
      %533 = vsyncadd [#allocation3], %s532
      %s534 = sshll.u32 [#allocation2], 4
      %s535 = int_to_ptr.vmem [resolvable:$true] %s534
      %540 = dma.vmem_to_hbm [thread:$0]  %s535, 256, %s6, [#allocation3], 128, 128, 8
    $region29: #{vgcn_encoder.1} parent=1 // pred_fallthru
      _
    // Predicated region
    $region30: #{vgcn_encoder.1} parent=1 // pred_check
      _
    $region31: #{vgcn_encoder.1} parent=1 // pred_check_branch
      %542 = sbr.rel (0) target = $region33
    $region32: #{vgcn_encoder.1} parent=1 // pred_region
      %s544 = ssub.s32 256, 256
      %545 = vsyncadd [#allocation5], %s544
      %s546 = sshll.u32 [#allocation4], 4
      %s547 = int_to_ptr.vmem [resolvable:$true] %s546
      %552 = dma.vmem_to_hbm [thread:$0]  %s547, 256, %s7, [#allocation5], 128, 128, 8
    $region33: #{vgcn_encoder.1} parent=1 // pred_fallthru
      _
    // Predicated region
    $region34: #{vgcn_encoder.1} parent=1 // pred_check
      _
    $region35: #{vgcn_encoder.1} parent=1 // pred_check_branch
      %554 = sbr.rel (0) target = $region37
    $region36: #{vgcn_encoder.1} parent=1 // pred_region
      %555 = dma.done [#allocation3], 256
    $region37: #{vgcn_encoder.1} parent=1 // pred_fallthru
      _
    // Predicated region
    $region38: #{vgcn_encoder.1} parent=1 // pred_check
      _
    $region39: #{vgcn_encoder.1} parent=1 // pred_check_branch
      %557 = sbr.rel (0) target = $region41
    $region40: #{vgcn_encoder.1} parent=1 // pred_region
      %558 = dma.done [#allocation5], 256
    $region41: #{vgcn_encoder.1} parent=1 // pred_fallthru
      _
    %559 = vsyncpa [#allocation3], 1
    %560 = vsyncpa [#allocation5], 1

</llo_original>
